<compile_context>
chip_gen: v5e
topology: v5e:2x2
jax: 0.10.0
libtpu: 0.0.40
codegen_flags: <defaults>
</compile_context>

<pallas_src>
import jax
import jax.numpy as jnp
from jax.experimental import pallas as pl
from jax.experimental.pallas import tpu as pltpu


def conv_im2row_kernel(x_ref, w_ref, o_ref):
    """Whole problem in one step.

    x_ref: (B*H, KH*W*C)  im2row-lowered input rows        (32, 144)
    w_ref: (KH*W*C, W*O)  banded / lowered conv weight     (144, 128)
    o_ref: (B*H, W*O)     lane-dense output rows           (32, 128)
    """
    # TODO(synk): add precision=jax.lax.Precision.HIGHEST if bit-parity with a
    # true f32 PyTorch conv is required (default TPU matmul uses bf16 passes).
    o_ref[...] = jnp.dot(
        x_ref[...], w_ref[...], preferred_element_type=jnp.float32
    ).astype(o_ref.dtype)


def _banded_weight(w_oihw, W):
    """Lower the (O, C, KH, KW) conv weight to a (KH*W*C, W*O) banded matrix.

    wband[kh*(W*C) + j*C + c, w*O + o] == weight[o, c, kh, kw] with j == w + kw - 1,
    zero elsewhere — the width zero-padding (padding=1) is absorbed by dropping
    out-of-range j.
    """
    O, C, KH, KW = w_oihw.shape
    w_hwio = jnp.transpose(w_oihw, (2, 3, 1, 0))                            # (KH, KW, C, O)
    shift = jnp.stack(
        [jnp.eye(W, W, k=1 - kw, dtype=w_oihw.dtype) for kw in range(KW)])  # (KW, W, W)
    wband = jnp.einsum("kjw,hkco->hjcwo", shift, w_hwio)                    # (KH, W, C, W, O)
    return wband.reshape(KH * W * C, W * O)


def prepare_conv_weight(w_oihw, W, dtype=jnp.float32):
    """One-time parameter transform — hoisted out of the per-call forward."""
    return _banded_weight(w_oihw, W).astype(dtype)


def minimal_conv_forward(x_nchw, wband):
    """MinimalConvModel.forward with a precomputed banded weight.

    x_nchw: (B, 3, H, W);  wband: (KH*W*C, W*O) from prepare_conv_weight.
    """
    B, C, H, W = x_nchw.shape
    KHWC, NO = wband.shape
    KH = KHWC // (W * C)                      # 3
    O = NO // W                               # 8
    pad = KH // 2

    # ---- layout glue (NCHW module interface): transpose + im2row build. ----
    # im2row folds the KH vertical taps into the contraction axis so the kernel
    # sees one aligned matmul with no sublane-offset slices.
    x_nhwc = jnp.transpose(x_nchw, (0, 2, 3, 1))                       # (B, H, W, C)
    x_pad = jnp.pad(x_nhwc, ((0, 0), (pad, pad), (0, 0), (0, 0)))      # (B, H+2p, W, C)
    x_rows = x_pad.reshape(B, H + 2 * pad, W * C)                      # (B, H+2p, W*C)
    x_im2row = jnp.concatenate(
        [x_rows[:, kh:kh + H, :] for kh in range(KH)], axis=-1)        # (B, H, KH*W*C)
    x_im2row = x_im2row.reshape(B * H, KHWC).astype(wband.dtype)       # (B*H, 144)

    M = B * H
    cost = pl.CostEstimate(
        flops=2 * M * KHWC * NO,
        transcendentals=0,
        bytes_accessed=(x_im2row.size * x_im2row.dtype.itemsize
                        + wband.size * wband.dtype.itemsize
                        + M * NO * jnp.dtype(x_nchw.dtype).itemsize))

    out_rows = pl.pallas_call(
        conv_im2row_kernel,
        out_shape=jax.ShapeDtypeStruct((M, NO), x_nchw.dtype),
        grid=(1,),                                       # single step: whole problem in VMEM
        in_specs=[
            pl.BlockSpec((M, KHWC), lambda i: (0, 0)),   # (32, 144)
            pl.BlockSpec((KHWC, NO), lambda i: (0, 0)),  # (144, 128) weights resident
        ],
        out_specs=pl.BlockSpec((M, NO), lambda i: (0, 0)),   # lane-dense (32, 128)
        compiler_params=pltpu.CompilerParams(
            dimension_semantics=("arbitrary",)),
        cost_estimate=cost,
    )(x_im2row, wband)

    out_nhwc = out_rows.reshape(B, H, W, O)
    return jnp.transpose(out_nhwc, (0, 3, 1, 2))                       # back to NCHW


def minimal_conv_model(x_nchw, w_oihw):
    """Convenience entry point equivalent to MinimalConvModel()(x)."""
    return minimal_conv_forward(x_nchw, prepare_conv_weight(w_oihw, x_nchw.shape[3]))


if __name__ == "__main__":
    key = jax.random.PRNGKey(0)
    kx, kw = jax.random.split(key)

    # Shapes implied by the module: B=2, Cin=3, H=W=16, Cout=8 (NCHW / OIHW).
    x = jax.random.normal(kx, (2, 3, 16, 16), dtype=jnp.float32)
    w = 0.1 * jax.random.normal(kw, (8, 3, 3, 3), dtype=jnp.float32)

    ref = jax.lax.conv_general_dilated(
        x, w, window_strides=(1, 1), padding="SAME",
        dimension_numbers=("NCHW", "OIHW", "NCHW"))

    # One-time parameter lowering, outside the jitted forward / hot path.
    wband = jax.block_until_ready(prepare_conv_weight(w, x.shape[3]))

    fwd = jax.jit(minimal_conv_forward)
    out = jax.block_until_ready(fwd(x, wband))
    assert out.shape == (2, 8, 16, 16)
    assert jnp.allclose(out, ref, atol=1e-4, rtol=1e-4)

    print("KERNEL_OK")
</pallas_src>

<mosaic_0001>
module attributes {stable_mosaic.version = 11 : i64} {
  func.func @conv_im2row_kernel(%arg0: i32, %arg1: memref<32x144xf32, #tpu.memory_space<vmem>>, %arg2: memref<144x128xf32, #tpu.memory_space<vmem>>, %arg3: memref<32x128xf32, #tpu.memory_space<vmem>>) attributes {dimension_semantics = [#tpu.dimension_semantics<arbitrary>], iteration_bounds = array<i64: 1>, scalar_prefetch = 0 : i64, scratch_operands = 0 : i64, tpu.core_type = #tpu.core_type<tc>, window_params = [{pipeline_mode = #tpu.pipeline_mode<synchronous>, transform_indices = @transform_0, window_bounds = array<i64: 32, 144>}, {pipeline_mode = #tpu.pipeline_mode<synchronous>, transform_indices = @transform_1, window_bounds = array<i64: 144, 128>}, {pipeline_mode = #tpu.pipeline_mode<synchronous>, transform_indices = @transform_2, window_bounds = array<i64: 32, 128>}]} {
    %c0 = arith.constant 0 : index
    %c0_0 = arith.constant 0 : index
    %0 = vector.load %arg1[%c0, %c0_0] : memref<32x144xf32, #tpu.memory_space<vmem>>, vector<32x144xf32>
    %c0_1 = arith.constant 0 : index
    %c0_2 = arith.constant 0 : index
    %1 = vector.load %arg2[%c0_1, %c0_2] : memref<144x128xf32, #tpu.memory_space<vmem>>, vector<144x128xf32>
    %cst = arith.constant dense<0.000000e+00> : vector<32x128xf32>
    %2 = tpu.matmul %0, %1, %cst {dimension_numbers = #tpu.dot_dimension_numbers<[1], [0], [0], [1], [0, 0, 1, 1], [], []>} : vector<32x144xf32>, vector<144x128xf32>, vector<32x128xf32> -> vector<32x128xf32>
    %c0_3 = arith.constant 0 : index
    %c0_4 = arith.constant 0 : index
    %3 = vector.load %arg3[%c0_3, %c0_4] : memref<32x128xf32, #tpu.memory_space<vmem>>, vector<32x128xf32>
    tpu.vector_store %arg3[%c0_3, %c0_4], %2 {strides = array<i32>} : memref<32x128xf32, #tpu.memory_space<vmem>>, vector<32x128xf32>,
    return
  }
  func.func @transform_0(%arg0: i32) -> (i32, i32) {
    %c0_i32 = arith.constant 0 : i32
    %c0_i32_0 = arith.constant 0 : i32
    %c0_i32_1 = arith.constant 0 : i32
    return %c0_i32, %c0_i32_0 : i32, i32
  }
  func.func @transform_1(%arg0: i32) -> (i32, i32) {
    %c0_i32 = arith.constant 0 : i32
    %c0_i32_0 = arith.constant 0 : i32
    %c0_i32_1 = arith.constant 0 : i32
    return %c0_i32, %c0_i32_0 : i32, i32
  }
  func.func @transform_2(%arg0: i32) -> (i32, i32) {
    %c0_i32 = arith.constant 0 : i32
    %c0_i32_0 = arith.constant 0 : i32
    %c0_i32_1 = arith.constant 0 : i32
    return %c0_i32, %c0_i32_0 : i32, i32
  }
}

</mosaic_0001>

<llo_original>
// kernel: minimal_conv_forward.1
$region0: #{minimal_conv_forward.1}
  #allocation0 [shape = 'u32[]', space=smem, size = 0x4, offset = 0x4, fixed_abs, tag = 'smem constant byte address 0x4 - core index']
  #allocation1 [shape = 'u32[72,128]{1,0:T(1,128)}', space=vmem, size = 0x9000, scoped, tag = 'internal scratch']
  %s0 = inlined_call_operand.vmem [shape: f32[32,144], index: 0, kind: input, shape index: {}]
  %s1 = inlined_call_operand.vmem [shape: f32[144,128], index: 1, kind: input, shape index: {}]
  %s2 = inlined_call_operand.vmem [shape: f32[32,128], index: 2, kind: output, shape index: {}]
  %s3 = sld [smem:[#allocation0]]
  $region18: #{minimal_conv_forward.1} parent=0
    _
  %s5 = ssub.s32 1, %s3
  %s6 = scalar_select 0, %s5, %s3
  // Predicated region
  $region2: #{minimal_conv_forward.1} parent=0 // pred_check
    _
  $region3: #{minimal_conv_forward.1} parent=0 // pred_check_branch
    %8 = sbr.rel (0) target = $region5
  $region4: #{minimal_conv_forward.1} parent=0 // pred_region
    _
  $region5: #{minimal_conv_forward.1} parent=0 // pred_fallthru
    _
  // Predicated region
  $region6: #{minimal_conv_forward.1} parent=0 // pred_check
    _
  $region7: #{minimal_conv_forward.1} parent=0 // pred_check_branch
    %10 = sbr.rel (0) target = $region9
  $region8: #{minimal_conv_forward.1} parent=0 // pred_region
    _
  $region9: #{minimal_conv_forward.1} parent=0 // pred_fallthru
    _
  %v11 = vld [vmem:[%s0] sm:$0xff]
  %v12 = vld [vmem:[%s0 + $0x8] sm:$0xff]
  %v13 = vld [vmem:[%s0 + $0x10] sm:$0xff]
  %v14 = vld [vmem:[%s0 + $0x18] sm:$0xff]
  %v15 = vld [vmem:[%s0 + $0x20] sm:$0xff]
  %v16 = vld [vmem:[%s0 + $0x28] sm:$0xff]
  %v17 = vld [vmem:[%s0 + $0x30] sm:$0xff]
  %v18 = vld [vmem:[%s0 + $0x38] sm:$0xff]
  %v19 = vld [vmem:[%s1] sm:$0xff]
  %v20 = vld [vmem:[%s1 + $0x8] sm:$0xff]
  %v21 = vld [vmem:[%s1 + $0x10] sm:$0xff]
  %v22 = vld [vmem:[%s1 + $0x18] sm:$0xff]
  %v23 = vld [vmem:[%s1 + $0x20] sm:$0xff]
  %v24 = vld [vmem:[%s1 + $0x28] sm:$0xff]
  %v25 = vld [vmem:[%s1 + $0x30] sm:$0xff]
  %v26 = vld [vmem:[%s1 + $0x38] sm:$0xff]
  %v27 = vld [vmem:[%s1 + $0x40] sm:$0xff]
  %v28 = vld [vmem:[%s1 + $0x48] sm:$0xff]
  %v29 = vld [vmem:[%s1 + $0x50] sm:$0xff]
  %v30 = vld [vmem:[%s1 + $0x58] sm:$0xff]
  %v31 = vld [vmem:[%s1 + $0x60] sm:$0xff]
  %v32 = vld [vmem:[%s1 + $0x68] sm:$0xff]
  %v33 = vld [vmem:[%s1 + $0x70] sm:$0xff]
  %v34 = vld [vmem:[%s1 + $0x78] sm:$0xff]
  %v35 = vld [vmem:[%s1 + $0x80] sm:$0xff]
  %v36 = vld [vmem:[%s1 + $0x88] sm:$0xff]
  %vm37 = vcmask 130048
  %v39 = vsel %vm37, %v12, 0
  %v42 = vsel %vm37, %v14, 0
  %v45 = vsel %vm37, %v16, 0
  %v48 = vsel %vm37, %v18, 0
  %50 = vmatpush.msra.mxu0 %v34
  %51 = vmatpush.msra.mxu0 %v33
  %52 = vmatpush.msra.mxu0 %v32
  %53 = vmatpush.msra.mxu0 %v31
  %54 = vmatpush.msra.mxu0 %v30
  %55 = vmatpush.msra.mxu0 %v29
  %56 = vmatpush.msra.mxu0 %v28
  %57 = vmatpush.msra.mxu0 %v27
  %58 = vmatpush.msra.mxu0 %v26
  %59 = vmatpush.msra.mxu0 %v25
  %60 = vmatpush.msra.mxu0 %v24
  %61 = vmatpush.msra.mxu0 %v23
  %62 = vmatpush.msra.mxu0 %v22
  %63 = vmatpush.msra.mxu0 %v21
  %64 = vmatpush.msra.mxu0 %v20
  %65 = vmatpush.msra.mxu0 %v19
  %66 = vmatmul.f32.gmra.mxu0 %v11
  %v67 = vpop.f32.mrf.mxu0
  %v68 = vadd.f32 0.0, %v67
  %69 = vmatmul.f32.gmra.mxu0 %v13
  %v70 = vpop.f32.mrf.mxu0
  %v71 = vadd.f32 0.0, %v70
  %72 = vmatmul.f32.gmra.mxu0 %v15
  %v73 = vpop.f32.mrf.mxu0
  %v74 = vadd.f32 0.0, %v73
  %75 = vmatmul.f32.gmra.mxu0 %v17
  %v76 = vpop.f32.mrf.mxu0
  %v77 = vadd.f32 0.0, %v76
  %78 = vdwg.mxu0
  %79 = vmatpush.msra.mxu0 0.0
  %80 = vmatpush.msra.mxu0 0.0
  %81 = vmatpush.msra.mxu0 0.0
  %82 = vmatpush.msra.mxu0 0.0
  %83 = vmatpush.msra.mxu0 0.0
  %84 = vmatpush.msra.mxu0 0.0
  %85 = vmatpush.msra.mxu0 0.0
  %86 = vmatpush.msra.mxu0 0.0
  %87 = vmatpush.msra.mxu0 0.0
  %88 = vmatpush.msra.mxu0 0.0
  %89 = vmatpush.msra.mxu0 0.0
  %90 = vmatpush.msra.mxu0 0.0
  %91 = vmatpush.msra.mxu0 0.0
  %92 = vmatpush.msra.mxu0 0.0
  %93 = vmatpush.msra.mxu0 %v36
  %94 = vmatpush.msra.mxu0 %v35
  %95 = vmatmul.f32.gmra.mxu0 %v39
  %v96 = vpop.f32.mrf.mxu0
  %v97 = vadd.f32 %v68, %v96
  %98 = vmatmul.f32.gmra.mxu0 %v42
  %v99 = vpop.f32.mrf.mxu0
  %v100 = vadd.f32 %v71, %v99
  %101 = vmatmul.f32.gmra.mxu0 %v45
  %v102 = vpop.f32.mrf.mxu0
  %v103 = vadd.f32 %v74, %v102
  %104 = vmatmul.f32.gmra.mxu0 %v48
  %v105 = vpop.f32.mrf.mxu0
  %v106 = vadd.f32 %v77, %v105
  %107 = vdwg.mxu0
  %108 = vst [vmem:[%s2] sm:$0xff] %v97
  %109 = vst [vmem:[%s2 + $0x8] sm:$0xff] %v100
  %110 = vst [vmem:[%s2 + $0x10] sm:$0xff] %v103
  %111 = vst [vmem:[%s2 + $0x18] sm:$0xff] %v106
  // Predicated region
  $region10: #{minimal_conv_forward.1} parent=0 // pred_check
    _
  $region11: #{minimal_conv_forward.1} parent=0 // pred_check_branch
    %113 = sbr.rel (0) target = $region13
  $region12: #{minimal_conv_forward.1} parent=0 // pred_region
    _
  $region13: #{minimal_conv_forward.1} parent=0 // pred_fallthru
    _
  // Predicated region
  $region14: #{minimal_conv_forward.1} parent=0 // pred_check
    _
  $region15: #{minimal_conv_forward.1} parent=0 // pred_check_branch
    %115 = sbr.rel (0) target = $region17
  $region16: #{minimal_conv_forward.1} parent=0 // pred_region
    _
  $region17: #{minimal_conv_forward.1} parent=0 // pred_fallthru
    _

</llo_original>
